<compile_context>
chip_gen: v5e
topology: v5e:2x2
jax: 0.10.0
libtpu: 0.0.40
codegen_flags: <defaults>
</compile_context>

<pallas_src>
import jax
import jax.numpy as jnp
from jax.experimental import pallas as pl
from jax.experimental.pallas import tpu as pltpu


def _drop_row_tanh_kernel(x_ref, o_ref):
    # x_ref: (tb, C, D)   o_ref: (tb, C-1, D)
    # The concat ([:, :3] ++ [:, 4:]) is two static sublane-slice copies with
    # tanh fused into each store.  No dynamic indexing, no grid-dependent
    # offsets; at aligned shapes these are plain unmasked vector ops.
    o_ref[:, :3, :] = jnp.tanh(x_ref[:, :3, :])
    o_ref[:, 3:, :] = jnp.tanh(x_ref[:, 4:, :])


def _pick_batch_tile(B, C, D, itemsize, vmem_budget_bytes=24 << 20):
    """Largest batch tile whose double-buffered in+out footprint fits VMEM."""
    per_batch = 2 * (C * D + (C - 1) * D) * itemsize  # 2x for double buffering
    tb = max(1, min(B, vmem_budget_bytes // max(per_batch, 1)))
    while B % tb != 0:  # keep blocks exact (no ragged trailing block)
        tb -= 1
    return tb


def model_forward(x):
    """x: (B, C, D) float array.

    Returns tanh(cat([x[:, :3], x[:, 4:]], dim=1).reshape(B, C, -1)),
    i.e. shape (B, C, (C-1)*D // C).
    """
    B, C, D = x.shape
    assert C >= 5, "module semantics require C >= 5 (x[:, 4:] must be non-empty)"
    out_rows = C - 1
    assert (out_rows * D) % C == 0, (
        "reshape(B, C, -1) must divide evenly; pick D so (C-1)*D % C == 0"
    )

    tb = _pick_batch_tile(B, C, D, x.dtype.itemsize)
    grid = (B // tb,)  # == (1,) at the shipped small shape

    out = pl.pallas_call(
        _drop_row_tanh_kernel,
        out_shape=jax.ShapeDtypeStruct((B, out_rows, D), x.dtype),
        grid=grid,
        in_specs=[
            # Last two dims equal the full array dims -> legal block regardless
            # of (8,128) alignment; batch axis is the only tiled axis.
            pl.BlockSpec((tb, C, D), lambda i: (i, 0, 0)),
        ],
        out_specs=pl.BlockSpec((tb, out_rows, D), lambda i: (i, 0, 0)),
        compiler_params=pltpu.CompilerParams(
            dimension_semantics=("parallel",),
            vmem_limit_bytes=32 << 20,  # explicit; safe on v5e/v6e/v7x
        ),
    )(x)

    return out.reshape(B, C, (out_rows * D) // C)


def _reference(x):
    """Pure-JAX reference mirroring the PyTorch forward exactly."""
    y = jnp.concatenate([x[:, :3], x[:, 4:]], axis=1)
    return jnp.tanh(y.reshape(y.shape[0], x.shape[1], -1))


if __name__ == "__main__":
    key = jax.random.PRNGKey(0)
    # Small shape consistent with the module: B=2, C=10 (row 3 dropped),
    # D=10 so the reshape back to C=10 rows divides evenly.
    x = jax.random.normal(key, (2, 10, 10), dtype=jnp.float32)

    out = jax.block_until_ready(model_forward(x))
    ref = _reference(x)

    assert out.shape == (2, 10, 9), out.shape
    assert jnp.allclose(out, ref, atol=1e-6, rtol=1e-6), "mismatch vs reference"

    print("KERNEL_OK")
</pallas_src>

<mosaic_0001>
module attributes {stable_mosaic.version = 11 : i64} {
  func.func @_drop_row_tanh_kernel(%arg0: i32, %arg1: memref<2x10x10xf32, #tpu.memory_space<vmem>>, %arg2: memref<2x9x10xf32, #tpu.memory_space<vmem>>) attributes {dimension_semantics = [#tpu.dimension_semantics<parallel>], iteration_bounds = array<i64: 1>, scalar_prefetch = 0 : i64, scratch_operands = 0 : i64, tpu.core_type = #tpu.core_type<tc>, window_params = [{transform_indices = @transform_0, window_bounds = array<i64: 2, 10, 10>}, {transform_indices = @transform_1, window_bounds = array<i64: 2, 9, 10>}]} {
    %c0 = arith.constant 0 : index
    %c0_0 = arith.constant 0 : index
    %c0_1 = arith.constant 0 : index
    %0 = vector.load %arg1[%c0, %c0_0, %c0_1] : memref<2x10x10xf32, #tpu.memory_space<vmem>>, vector<2x3x10xf32>
    %1 = math.tanh %0 : vector<2x3x10xf32>
    %c0_2 = arith.constant 0 : index
    %c0_3 = arith.constant 0 : index
    %c0_4 = arith.constant 0 : index
    %2 = vector.load %arg2[%c0_2, %c0_3, %c0_4] : memref<2x9x10xf32, #tpu.memory_space<vmem>>, vector<2x3x10xf32>
    tpu.vector_store %arg2[%c0_2, %c0_3, %c0_4], %1 {strides = array<i32>} : memref<2x9x10xf32, #tpu.memory_space<vmem>>, vector<2x3x10xf32>,
    %c0_5 = arith.constant 0 : index
    %c4 = arith.constant 4 : index
    %c0_6 = arith.constant 0 : index
    %3 = vector.load %arg1[%c0_5, %c4, %c0_6] : memref<2x10x10xf32, #tpu.memory_space<vmem>>, vector<2x6x10xf32>
    %4 = math.tanh %3 : vector<2x6x10xf32>
    %c0_7 = arith.constant 0 : index
    %c3 = arith.constant 3 : index
    %c0_8 = arith.constant 0 : index
    %5 = vector.load %arg2[%c0_7, %c3, %c0_8] : memref<2x9x10xf32, #tpu.memory_space<vmem>>, vector<2x6x10xf32>
    tpu.vector_store %arg2[%c0_7, %c3, %c0_8], %4 {strides = array<i32>} : memref<2x9x10xf32, #tpu.memory_space<vmem>>, vector<2x6x10xf32>,
    return
  }
  func.func @transform_0(%arg0: i32) -> (i32, i32, i32) {
    %c0_i32 = arith.constant 0 : i32
    %c0_i32_0 = arith.constant 0 : i32
    %c0_i32_1 = arith.constant 0 : i32
    return %arg0, %c0_i32, %c0_i32_0 : i32, i32, i32
  }
  func.func @transform_1(%arg0: i32) -> (i32, i32, i32) {
    %c0_i32 = arith.constant 0 : i32
    %c0_i32_0 = arith.constant 0 : i32
    %c0_i32_1 = arith.constant 0 : i32
    return %arg0, %c0_i32, %c0_i32_0 : i32, i32, i32
  }
}

</mosaic_0001>

<llo_original>
// kernel: tpu_custom_call.1
$region0: #{tpu_custom_call.1}
  #allocation0 [shape = 'u32[]', space=smem, size = 0x4, offset = 0x4, fixed_abs, tag = 'smem constant byte address 0x4 - core index']
  #allocation1 [shape = 'u32[72,128]{1,0:T(1,128)}', space=vmem, size = 0x9000, scoped, tag = 'internal scratch']
  %s0 = inlined_call_operand.vmem [shape: f32[2,10,10], index: 0, kind: input, shape index: {}]
  %s1 = inlined_call_operand.vmem [shape: f32[2,9,10], index: 1, kind: output, shape index: {}]
  %s2 = sld [smem:[#allocation0]]
  $region14: #{tpu_custom_call.1} parent=0
    _
  %s4 = ssub.s32 1, %s2
  %s5 = scalar_select 0, %s4, %s2
  // Predicated region
  $region2: #{tpu_custom_call.1} parent=0 // pred_check
    _
  $region3: #{tpu_custom_call.1} parent=0 // pred_check_branch
    %7 = sbr.rel (0) target = $region5
  $region4: #{tpu_custom_call.1} parent=0 // pred_region
    _
  $region5: #{tpu_custom_call.1} parent=0 // pred_fallthru
    _
  %v8 = vld [vmem:[%s0] sm:$0x7]
  %v9 = vld [vmem:[%s0 + $0x10] sm:$0x7]
  %v10 = vtanh.pop %v8
  %v11 = vtanh.pop %v9
  %vm12 = vcmask 75776
  %13 = vst.msk [vmem:[%s1] sm:$0x7] %vm12, %v10
  %14 = vst.msk [vmem:[%s1 + $0x10] sm:$0x7] %vm12, %v11
  %v15 = vld [vmem:[%s0 + $0x4] sm:$0x3f]
  %v16 = vld [vmem:[%s0 + $0x14] sm:$0x3f]
  %v17 = vtanh.pop %v15
  %v18 = vtanh.pop %v16
  %vm19 = vcmask 78848
  %20 = vst.msk [vmem:[%s1 + $0x3] sm:$0x3f] %vm19, %v17
  %21 = vst.msk [vmem:[%s1 + $0x13] sm:$0x3f] %vm19, %v18
  // Predicated region
  $region6: #{tpu_custom_call.1} parent=0 // pred_check
    _
  $region7: #{tpu_custom_call.1} parent=0 // pred_check_branch
    %23 = sbr.rel (0) target = $region9
  $region8: #{tpu_custom_call.1} parent=0 // pred_region
    _
  $region9: #{tpu_custom_call.1} parent=0 // pred_fallthru
    _
  // Predicated region
  $region10: #{tpu_custom_call.1} parent=0 // pred_check
    _
  $region11: #{tpu_custom_call.1} parent=0 // pred_check_branch
    %25 = sbr.rel (0) target = $region13
  $region12: #{tpu_custom_call.1} parent=0 // pred_region
    _
  $region13: #{tpu_custom_call.1} parent=0 // pred_fallthru
    _

</llo_original>
